<compile_context>
chip_gen: v7x
topology: tpu7x:2x2x1
jax: 0.10.0
libtpu: 0.0.40
codegen_flags: <defaults>
</compile_context>

<pallas_src>
import math

import jax
import jax.numpy as jnp
from jax.experimental import pallas as pl
from jax.experimental.pallas import tpu as pltpu

EPS = 1e-6

# TODO(synk): encoder / classifier / src_embed / pos_emb are opaque nn.Modules passed
# into Model.__init__ with no definition in the spec; only the residual sublayer
# connection (x + LayerNorm(x)) used throughout that encoder is implemented here.
# Dropout is treated as identity (inference forward pass).


def _sublayer_connection_kernel(x_ref, a_ref, b_ref, o_ref):
    # x_ref: (tile_rows, H) tile; a_ref / b_ref: (1, H) broadcast params.
    x = x_ref[...].astype(jnp.float32)                       # (tR, H)
    h = x.shape[-1]

    # One-pass row statistics: sum(x) and sum(x*x) (single XLU reduce pass each).
    s = jnp.sum(x, axis=-1, keepdims=True)                   # (tR, 1)
    sq = jnp.sum(x * x, axis=-1, keepdims=True)              # (tR, 1)
    mean = s * jnp.float32(1.0 / h)
    # Unbiased (ddof = h-1) variance; clamp guards against fp cancellation.
    var = jnp.maximum(sq - mean * s, 0.0) * jnp.float32(1.0 / (h - 1))
    std = jnp.sqrt(var)

    d = std + jnp.float32(EPS)
    # EUP approximate reciprocal + one Newton step (near-exact; keeps the divide
    # off the VALU and on the otherwise-idle EUP slot).
    r = pl.reciprocal(d, approx=True)
    r = r * (jnp.float32(2.0) - d * r)                       # (tR, 1)

    a = a_ref[...].astype(jnp.float32)                       # (1, H)
    b = b_ref[...].astype(jnp.float32)                       # (1, H)

    normed = a * ((x - mean) * r) + b                        # sublayer(x) = LayerNorm(x)
    o_ref[...] = (x + normed).astype(o_ref.dtype)            # residual connection


def sublayer_connection(x, a_2, b_2, *, target_tile_bytes=2 * 1024 * 1024):
    """x: (..., H); a_2, b_2: (H,).  Returns x + LayerNorm(x)."""
    orig_shape = x.shape
    H = orig_shape[-1]
    rows = math.prod(orig_shape[:-1])

    x2 = x.reshape(rows, H)
    a2 = a_2.reshape(1, H)
    b2 = b_2.reshape(1, H)

    itemsize = jnp.dtype(x.dtype).itemsize
    bytes_per_row = H * itemsize
    # ~2 MiB tiles, rows rounded down to a multiple of 8 (sublane granularity).
    tile_rows = max(8, (target_tile_bytes // bytes_per_row) // 8 * 8)
    if tile_rows >= rows:
        tile_rows = rows                    # full extent is always a legal block
    grid = (pl.cdiv(rows, tile_rows),)

    out2 = pl.pallas_call(
        _sublayer_connection_kernel,
        out_shape=jax.ShapeDtypeStruct((rows, H), x.dtype),
        grid_spec=pltpu.PrefetchScalarGridSpec(
            num_scalar_prefetch=0,
            grid=grid,
            in_specs=[
                pl.BlockSpec((tile_rows, H), lambda i: (i, 0)),   # x row tile
                pl.BlockSpec((1, H), lambda i: (0, 0)),           # a_2 (broadcast)
                pl.BlockSpec((1, H), lambda i: (0, 0)),           # b_2 (broadcast)
            ],
            out_specs=pl.BlockSpec((tile_rows, H), lambda i: (i, 0)),
        ),
        compiler_params=pltpu.CompilerParams(
            dimension_semantics=("parallel",)),
    )(x2, a2, b2)

    return out2.reshape(orig_shape)


def _reference(x, a_2, b_2):
    mean = jnp.mean(x, axis=-1, keepdims=True)
    diff = x - mean
    var = jnp.sum(diff * diff, axis=-1, keepdims=True) / (x.shape[-1] - 1)
    std = jnp.sqrt(var)
    normed = a_2 * diff / (std + EPS) + b_2
    return x + normed


if __name__ == "__main__":
    key = jax.random.PRNGKey(0)

    # ---- Case 1: small, single-tile (grid = 1), H lane-dense (multiple of 128) ----
    B, S, H = 2, 8, 128
    x = jax.random.normal(key, (B, S, H), dtype=jnp.float32)
    # Deterministic params, matching nn.Parameter(torch.ones/zeros(features)).
    a_2 = jnp.ones((H,), dtype=jnp.float32)
    b_2 = jnp.zeros((H,), dtype=jnp.float32)

    out = jax.block_until_ready(sublayer_connection(x, a_2, b_2))
    ref = _reference(x, a_2, b_2)
    assert out.shape == (B, S, H)
    assert jnp.allclose(out, ref, atol=1e-5, rtol=1e-5), "mismatch vs reference (case 1)"

    # ---- Case 2: multi-tile grid path (small target tile so grid > 1) ----
    key2 = jax.random.PRNGKey(0)
    B2, S2, H2 = 4, 64, 256
    x2 = jax.random.normal(key2, (B2, S2, H2), dtype=jnp.float32)
    a_2b = jnp.ones((H2,), dtype=jnp.float32)
    b_2b = jnp.zeros((H2,), dtype=jnp.float32)

    out2 = jax.block_until_ready(
        sublayer_connection(x2, a_2b, b_2b, target_tile_bytes=64 * 1024))
    ref2 = _reference(x2, a_2b, b_2b)
    assert out2.shape == (B2, S2, H2)
    assert jnp.allclose(out2, ref2, atol=1e-5, rtol=1e-5), "mismatch vs reference (case 2)"

    print("KERNEL_OK")
</pallas_src>

<mosaic_0001>
module attributes {stable_mosaic.version = 11 : i64} {
  func.func @_sublayer_connection_kernel(%arg0: i32, %arg1: memref<16x128xf32, #tpu.memory_space<vmem>>, %arg2: memref<1x128xf32, #tpu.memory_space<vmem>>, %arg3: memref<1x128xf32, #tpu.memory_space<vmem>>, %arg4: memref<16x128xf32, #tpu.memory_space<vmem>>) attributes {dimension_semantics = [#tpu.dimension_semantics<parallel>], iteration_bounds = array<i64: 1>, scalar_prefetch = 0 : i64, scratch_operands = 0 : i64, tpu.core_type = #tpu.core_type<tc>, window_params = [{transform_indices = @transform_0, window_bounds = array<i64: 16, 128>}, {pipeline_mode = #tpu.pipeline_mode<synchronous>, transform_indices = @transform_1, window_bounds = array<i64: 1, 128>}, {pipeline_mode = #tpu.pipeline_mode<synchronous>, transform_indices = @transform_2, window_bounds = array<i64: 1, 128>}, {transform_indices = @transform_3, window_bounds = array<i64: 16, 128>}]} {
    %c0 = arith.constant 0 : index
    %c0_0 = arith.constant 0 : index
    %0 = vector.load %arg1[%c0, %c0_0] : memref<16x128xf32, #tpu.memory_space<vmem>>, vector<16x128xf32>
    %cst = arith.constant dense<0.000000e+00> : vector<16xf32>
    %1 = vector.multi_reduction <add>, %0, %cst [1] : vector<16x128xf32> to vector<16xf32>
    %2 = vector.shape_cast %1 : vector<16xf32> to vector<16x1xf32>
    %3 = arith.mulf %0, %0 : vector<16x128xf32>
    %cst_1 = arith.constant dense<0.000000e+00> : vector<16xf32>
    %4 = vector.multi_reduction <add>, %3, %cst_1 [1] : vector<16x128xf32> to vector<16xf32>
    %5 = vector.shape_cast %4 : vector<16xf32> to vector<16x1xf32>
    %cst_2 = arith.constant 7.812500e-03 : f32
    %6 = vector.broadcast %cst_2 : f32 to vector<16x1xf32>
    %7 = arith.mulf %2, %6 : vector<16x1xf32>
    %8 = arith.mulf %7, %2 : vector<16x1xf32>
    %9 = arith.subf %5, %8 : vector<16x1xf32>
    %cst_3 = arith.constant 0.000000e+00 : f32
    %10 = vector.broadcast %cst_3 : f32 to vector<16x1xf32>
    %11 = arith.maximumf %9, %10 : vector<16x1xf32>
    %cst_4 = arith.constant 0.00787401571 : f32
    %12 = vector.broadcast %cst_4 : f32 to vector<16x1xf32>
    %13 = arith.mulf %11, %12 : vector<16x1xf32>
    %14 = math.sqrt %13 : vector<16x1xf32>
    %cst_5 = arith.constant 9.99999997E-7 : f32
    %15 = vector.broadcast %cst_5 : f32 to vector<16x1xf32>
    %16 = arith.addf %14, %15 : vector<16x1xf32>
    %17 = tpu.reciprocal %16 {approx = true} : vector<16x1xf32> -> vector<16x1xf32>
    %18 = arith.mulf %16, %17 : vector<16x1xf32>
    %cst_6 = arith.constant 2.000000e+00 : f32
    %19 = vector.broadcast %cst_6 : f32 to vector<16x1xf32>
    %20 = arith.subf %19, %18 : vector<16x1xf32>
    %21 = arith.mulf %17, %20 : vector<16x1xf32>
    %c0_7 = arith.constant 0 : index
    %c0_8 = arith.constant 0 : index
    %22 = vector.load %arg2[%c0_7, %c0_8] : memref<1x128xf32, #tpu.memory_space<vmem>>, vector<1x128xf32>
    %c0_9 = arith.constant 0 : index
    %c0_10 = arith.constant 0 : index
    %23 = vector.load %arg3[%c0_9, %c0_10] : memref<1x128xf32, #tpu.memory_space<vmem>>, vector<1x128xf32>
    %24 = vector.broadcast %7 : vector<16x1xf32> to vector<16x128xf32>
    %25 = arith.subf %0, %24 : vector<16x128xf32>
    %26 = vector.broadcast %21 : vector<16x1xf32> to vector<16x128xf32>
    %27 = arith.mulf %25, %26 : vector<16x128xf32>
    %28 = vector.broadcast %22 : vector<1x128xf32> to vector<16x128xf32>
    %29 = arith.mulf %28, %27 : vector<16x128xf32>
    %30 = vector.broadcast %23 : vector<1x128xf32> to vector<16x128xf32>
    %31 = arith.addf %29, %30 : vector<16x128xf32>
    %32 = arith.addf %0, %31 : vector<16x128xf32>
    %c0_11 = arith.constant 0 : index
    %c0_12 = arith.constant 0 : index
    %33 = vector.load %arg4[%c0_11, %c0_12] : memref<16x128xf32, #tpu.memory_space<vmem>>, vector<16x128xf32>
    tpu.vector_store %arg4[%c0_11, %c0_12], %32 {strides = array<i32>} : memref<16x128xf32, #tpu.memory_space<vmem>>, vector<16x128xf32>,
    return
  }
  func.func @transform_0(%arg0: i32) -> (i32, i32) {
    %c0_i32 = arith.constant 0 : i32
    %c0_i32_0 = arith.constant 0 : i32
    return %arg0, %c0_i32 : i32, i32
  }
  func.func @transform_1(%arg0: i32) -> (i32, i32) {
    %c0_i32 = arith.constant 0 : i32
    %c0_i32_0 = arith.constant 0 : i32
    %c0_i32_1 = arith.constant 0 : i32
    return %c0_i32, %c0_i32_0 : i32, i32
  }
  func.func @transform_2(%arg0: i32) -> (i32, i32) {
    %c0_i32 = arith.constant 0 : i32
    %c0_i32_0 = arith.constant 0 : i32
    %c0_i32_1 = arith.constant 0 : i32
    return %c0_i32, %c0_i32_0 : i32, i32
  }
  func.func @transform_3(%arg0: i32) -> (i32, i32) {
    %c0_i32 = arith.constant 0 : i32
    %c0_i32_0 = arith.constant 0 : i32
    return %arg0, %c0_i32 : i32, i32
  }
}

</mosaic_0001>

<llo_original>
// kernel: tpu_custom_call.1
$region0: #{tpu_custom_call.1}
  #allocation0 [shape = 'u32[]', space=smem, size = 0x4, offset = 0x4, fixed_abs, tag = 'smem constant byte address 0x4 - core index']
  #allocation1 [shape = 'u32[144,128]{1,0:T(1,128)}', space=vmem, size = 0x12000, scoped, tag = 'internal scratch']
  %s0 = inlined_call_operand.hbm [shape: f32[16,128], index: 0, kind: input, shape index: {}]
  %s1 = inlined_call_operand.vmem [shape: f32[1,128], index: 1, kind: input, shape index: {}]
  %s2 = inlined_call_operand.vmem [shape: f32[1,128], index: 2, kind: input, shape index: {}]
  %s3 = inlined_call_operand.hbm [shape: f32[16,128], index: 3, kind: output, shape index: {}]
  %s4 = sld [smem:[#allocation0]]
  $region26: #{tpu_custom_call.1} parent=0
    _
  %s6 = ssub.s32 1, %s4
  %s7 = scalar_select 0, %s6, %s4
  $region1: #{tpu_custom_call.1} parent=0
    #allocation2 [shape = 'u8[8192]{0}', space=vmem, size = 0x2000, scoped, tag = 'input window, operand 0, single buffered']
    #allocation3 [shape = 's32[1]{0}', space=sflag, size = 0x4, scoped, tag = 'scoped memory for tpu_custom_call.1']
    #allocation4 [shape = 's32[1]{0}', space=sflag, size = 0x4, scoped, tag = 'scoped memory for tpu_custom_call.1']
    #allocation5 [shape = 'u8[8192]{0}', space=vmem, size = 0x2000, scoped, tag = 'output window, operand 0, single buffered']
    %8 = vsyncpa [#allocation3], 0
    %9 = vsyncpa [#allocation4], 0
    // Predicated region
    $region2: #{tpu_custom_call.1} parent=1 // pred_check
      _
    $region3: #{tpu_custom_call.1} parent=1 // pred_check_branch
      %11 = sbr.rel (0) target = $region5
    $region4: #{tpu_custom_call.1} parent=1 // pred_region
      %s13 = ssub.s32 256, 256
      %14 = vsyncadd [#allocation3], %s13
      %s15 = sshll.u32 [#allocation2], 4
      %s16 = int_to_ptr.vmem [resolvable:$true] %s15
      %21 = dma.hbm_to_vmem [thread:$0]  %s0, 256, %s16, [#allocation3], 128, 128, 8
    $region5: #{tpu_custom_call.1} parent=1 // pred_fallthru
      _
    // Predicated region
    $region6: #{tpu_custom_call.1} parent=1 // pred_check
      _
    $region7: #{tpu_custom_call.1} parent=1 // pred_check_branch
      %23 = sbr.rel (0) target = $region9
    $region8: #{tpu_custom_call.1} parent=1 // pred_region
      _
    $region9: #{tpu_custom_call.1} parent=1 // pred_fallthru
      _
    // Predicated region
    $region10: #{tpu_custom_call.1} parent=1 // pred_check
      _
    $region11: #{tpu_custom_call.1} parent=1 // pred_check_branch
      %25 = sbr.rel (0) target = $region13
    $region12: #{tpu_custom_call.1} parent=1 // pred_region
      _
    $region13: #{tpu_custom_call.1} parent=1 // pred_fallthru
      _
    // Predicated region
    $region14: #{tpu_custom_call.1} parent=1 // pred_check
      _
    $region15: #{tpu_custom_call.1} parent=1 // pred_check_branch
      %27 = sbr.rel (0) target = $region17
    $region16: #{tpu_custom_call.1} parent=1 // pred_region
      %28 = dma.done [#allocation3], 256
    $region17: #{tpu_custom_call.1} parent=1 // pred_fallthru
      _
    %v29 = vld [vmem:[#allocation2] sm:$0xff]
    %v30 = vld [vmem:[#allocation2 + $0x8] sm:$0xff]
    %31 = vadd.xlane.f32.xlu0 %v29
    %v32 = vpop.xlane.xlu0 %31
    %33 = vadd.xlane.f32.xlu0 %v30
    %v34 = vpop.xlane.xlu0 %33
    %v35 = vmul.f32 %v29, %v29
    %v36 = vmul.f32 %v30, %v30
    %37 = vadd.xlane.f32.xlu0 %v35
    %v38 = vpop.xlane.xlu0 %37
    %39 = vadd.xlane.f32.xlu0 %v36
    %v40 = vpop.xlane.xlu0 %39
    %v41 = vmul.f32 %v32, 0.0078125
    %v42 = vmul.f32 %v34, 0.0078125
    %v43 = vmul.f32 %v41, %v32
    %v44 = vmul.f32 %v42, %v34
    %v45 = vsub.f32 %v38, %v43
    %v46 = vsub.f32 %v40, %v44
    %v47 = vmax.f32 %v45, 0.0
    %v48 = vmax.f32 %v46, 0.0
    %v49 = vmul.f32 %v47, 0.007874016
    %v50 = vmul.f32 %v48, 0.007874016
    %v51 = vrsqrt.pop %v49
    %v52 = vmul.f32 %v49, %v51
    %vm53 = vcmp.eq.f32.partialorder %v49, inf
    %v54 = vsel %vm53, %v49, %v52
    %vm55 = vcmp.eq.f32.partialorder %v49, 0.0
    %v56 = vand.u32 %v49, 2147483648
    %v57 = vsel %vm55, %v56, %v54
    %v58 = vrsqrt.pop %v50
    %v59 = vmul.f32 %v50, %v58
    %vm60 = vcmp.eq.f32.partialorder %v50, inf
    %v61 = vsel %vm60, %v50, %v59
    %vm62 = vcmp.eq.f32.partialorder %v50, 0.0
    %v63 = vand.u32 %v50, 2147483648
    %v64 = vsel %vm62, %v63, %v61
    %v65 = vadd.f32 %v57, 1e-06
    %v66 = vadd.f32 %v64, 1e-06
    %v67 = vrcp.pop %v65
    %v68 = vrcp.pop %v66
    %v69 = vmul.f32 %v65, %v67
    %v70 = vmul.f32 %v66, %v68
    %v71 = vsub.f32 2.0, %v69
    %v72 = vsub.f32 2.0, %v70
    %v73 = vmul.f32 %v67, %v71
    %v74 = vmul.f32 %v68, %v72
    %v75 = vld [vmem:[%s1] sm:$0x1]
    %v76 = vld [vmem:[%s2] sm:$0x1]
    %v77 = vsub.f32 %v29, %v41
    %v78 = vsub.f32 %v30, %v42
    %v79 = vmul.f32 %v77, %v73
    %v80 = vmul.f32 %v78, %v74
    %v82 = vlaneseq
    %v83 = vshrl.u32 %v82, 7
    %v84 = vsub.s32 0, %v83
    %v85 = vrot.slane %v75, %v84
    %v87 = vmul.f32 %v85, %v79
    %v88 = vmul.f32 %v85, %v80
    %v90 = vlaneseq
    %v91 = vshrl.u32 %v90, 7
    %v92 = vsub.s32 0, %v91
    %v93 = vrot.slane %v76, %v92
    %v95 = vadd.f32 %v87, %v93
    %v96 = vadd.f32 %v88, %v93
    %v97 = vadd.f32 %v29, %v95
    %v98 = vadd.f32 %v30, %v96
    %99 = vst [vmem:[#allocation5] sm:$0xff] %v97
    %100 = vst [vmem:[#allocation5 + $0x8] sm:$0xff] %v98
    // Predicated region
    $region18: #{tpu_custom_call.1} parent=1 // pred_check
      _
    $region19: #{tpu_custom_call.1} parent=1 // pred_check_branch
      %102 = sbr.rel (0) target = $region21
    $region20: #{tpu_custom_call.1} parent=1 // pred_region
      %s104 = ssub.s32 256, 256
      %105 = vsyncadd [#allocation4], %s104
      %s106 = sshll.u32 [#allocation5], 4
      %s107 = int_to_ptr.vmem [resolvable:$true] %s106
      %112 = dma.vmem_to_hbm [thread:$0]  %s107, 256, %s3, [#allocation4], 128, 128, 8
    $region21: #{tpu_custom_call.1} parent=1 // pred_fallthru
      _
    // Predicated region
    $region22: #{tpu_custom_call.1} parent=1 // pred_check
      _
    $region23: #{tpu_custom_call.1} parent=1 // pred_check_branch
      %114 = sbr.rel (0) target = $region25
    $region24: #{tpu_custom_call.1} parent=1 // pred_region
      %115 = dma.done [#allocation4], 256
    $region25: #{tpu_custom_call.1} parent=1 // pred_fallthru
      _
    %116 = vsyncpa [#allocation3], 1
    %117 = vsyncpa [#allocation4], 1

</llo_original>
